<compile_context>
chip_gen: v7x
topology: tpu7x:2x2x1
jax: 0.10.0
libtpu: 0.0.40
codegen_flags: <defaults>
</compile_context>

<pallas_src>
import functools

import jax
import jax.numpy as jnp
from jax import lax
from jax.experimental import pallas as pl
from jax.experimental.pallas import tpu as pltpu

NUM_CLASSES = 49      # from torchmetrics.Dice(num_classes=49)
MAX_TILE = 2048       # max pixel-lanes per grid step (multiple of 128)
CORE_SPLIT = 2        # leading "parallel" grid axis; uses both TCs on v7x


def _ce_dice_kernel(tgt_ref, logits_ref, w_ref,
                    wnll_out, w_out, corr_out,
                    *, hw, tile, tiles_per_core, num_classes):
    """Per-tile lane-wise partial sums, accumulated into grid-resident outputs.

    tgt_ref    : (1, 1, TILE)  int32  target class per pixel
    logits_ref : (1, C, TILE)  f32    logits, classes on sublanes, pixels on lanes
    w_ref      : (C, 1)        f32    CE class weights
    wnll_out   : (1, 1, TILE)  f32    per-lane sum of w[t] * nll
    w_out      : (1, 1, TILE)  f32    per-lane sum of w[t]
    corr_out   : (1, 1, TILE)  f32    per-lane count of correct argmax predictions
    """
    c = pl.program_id(0)   # core-split index ("parallel")
    n = pl.program_id(1)   # batch index
    j = pl.program_id(2)   # hw-tile index within this core's range

    # Zero this core's accumulator rows at the first step of its sub-grid.
    @pl.when(jnp.logical_and(n == 0, j == 0))
    def _():
        wnll_out[...] = jnp.zeros_like(wnll_out)
        w_out[...] = jnp.zeros_like(w_out)
        corr_out[...] = jnp.zeros_like(corr_out)

    logits = logits_ref[0].astype(jnp.float32)   # (C, TILE)
    tgt = tgt_ref[0]                             # (1, TILE) int32

    # Valid-pixel mask: handles a partial final tile and the clamped overrun tiles
    # created by the core split (their contribution must be exactly zero).
    tile_idx = c * tiles_per_core + j
    lane = lax.broadcasted_iota(jnp.int32, (1, tile), 1)
    valid = (tile_idx * tile + lane) < hw        # (1, TILE) bool

    # --- log-softmax pieces over the class (sublane) axis ---
    col_max = jnp.max(logits, axis=0, keepdims=True)                  # (1, TILE)
    shifted = logits - col_max                                        # (C, TILE)
    lse = jnp.log(jnp.sum(jnp.exp(shifted), axis=0, keepdims=True))   # (1, TILE)

    # --- gather shifted[target] and w[target] via one-hot (no full logp tensor) ---
    cls = lax.broadcasted_iota(jnp.int32, logits.shape, 0)            # (C, TILE)
    onehot = (cls == tgt).astype(jnp.float32)                         # (C, TILE)
    sel_shift = jnp.sum(onehot * shifted, axis=0, keepdims=True)      # (1, TILE)
    sel_w = jnp.sum(onehot * w_ref[...], axis=0, keepdims=True)       # (1, TILE)
    wnll = sel_w * (lse - sel_shift)                                  # (1, TILE)

    # --- argmax over classes (first-max index, like torch.argmax) ---
    pred_cls = jnp.min(jnp.where(logits == col_max, cls, num_classes),
                       axis=0, keepdims=True)                         # (1, TILE)
    correct = (pred_cls == tgt).astype(jnp.float32)                   # (1, TILE)

    zero = jnp.zeros_like(wnll)
    wnll_out[...] += jnp.where(valid, wnll, zero)[None]
    w_out[...] += jnp.where(valid, sel_w, zero)[None]
    corr_out[...] += jnp.where(valid, correct, zero)[None]


@functools.partial(jax.jit, static_argnames=("ce_weight", "dice_weight"))
def ce_and_dice_loss(pred, target, ce_class_weights, ce_weight=0.5, dice_weight=0.5):
    """pred: (N, C, H, W) logits (f32 or bf16); target: (N, H, W) int class ids."""
    N, C, H, W = pred.shape
    assert C == NUM_CLASSES
    HW = H * W

    # Tile of pixel lanes: full extent if small, else a 128-multiple up to MAX_TILE.
    tile = HW if HW <= MAX_TILE else MAX_TILE
    tn = pl.cdiv(HW, tile)              # total hw tiles per image
    tpc = pl.cdiv(tn, CORE_SPLIT)       # hw tiles per core-split slice

    # Native NCHW layout: only free reshapes (no transpose, no class-axis pad, no cast).
    x = pred.reshape(N, C, HW)
    t = target.reshape(N, 1, HW).astype(jnp.int32)
    w = ce_class_weights.astype(jnp.float32).reshape(C, 1)

    def hw_block(c, n, j):
        # Clamp overrun tiles from the core split back in-bounds (masked in-kernel).
        return jnp.minimum(c * tpc + j, tn - 1)

    kernel = functools.partial(_ce_dice_kernel, hw=HW, tile=tile,
                               tiles_per_core=tpc, num_classes=C)

    acc_shape = jax.ShapeDtypeStruct((CORE_SPLIT, 1, tile), jnp.float32)
    acc_spec = pl.BlockSpec((1, 1, tile), lambda c, n, j: (c, 0, 0))

    wnll_acc, w_acc, corr_acc = pl.pallas_call(
        kernel,
        out_shape=(acc_shape, acc_shape, acc_shape),
        grid_spec=pltpu.PrefetchScalarGridSpec(
            num_scalar_prefetch=0,
            grid=(CORE_SPLIT, N, tpc),
            in_specs=[
                pl.BlockSpec((1, 1, tile), lambda c, n, j: (n, 0, hw_block(c, n, j))),  # target
                pl.BlockSpec((1, C, tile), lambda c, n, j: (n, 0, hw_block(c, n, j))),  # logits
                pl.BlockSpec((C, 1), lambda c, n, j: (0, 0)),                           # weights
            ],
            out_specs=[acc_spec, acc_spec, acc_spec],
        ),
        compiler_params=pltpu.CompilerParams(
            dimension_semantics=("parallel", "arbitrary", "arbitrary")),
    )(t, x, w)

    sum_wnll = jnp.sum(wnll_acc)
    sum_w = jnp.sum(w_acc)
    correct = jnp.sum(corr_acc)
    total = jnp.float32(N * HW)

    # CrossEntropyLoss(weight=...) default 'mean' reduction: sum(w[t]*nll) / sum(w[t])
    ce = sum_wnll / sum_w
    # torchmetrics.Dice(num_classes=49) default micro average of argmax preds:
    # 2*TP / (2*TP + FP + FN) with TP = #correct, FP = FN = #incorrect.
    tp = correct
    fpfn = total - correct
    dice = (2.0 * tp) / (2.0 * tp + fpfn + fpfn)
    # NOTE: torchmetrics.Dice returns the dice *coefficient* (not 1 - dice); the
    # reference module mixes that coefficient directly, so we do the same.
    return ce_weight * ce + dice_weight * dice


def _reference(pred, target, class_weights, ce_weight=0.5, dice_weight=0.5):
    """Pure-JAX reference for correctness checking."""
    N, C, H, W = pred.shape
    x = jnp.transpose(pred, (0, 2, 3, 1)).reshape(-1, C)
    t = target.reshape(-1)
    logp = jax.nn.log_softmax(x, axis=-1)
    nll = -jnp.take_along_axis(logp, t[:, None], axis=-1)[:, 0]
    w_t = class_weights[t]
    ce = jnp.sum(w_t * nll) / jnp.sum(w_t)
    pred_cls = jnp.argmax(x, axis=-1)
    correct = jnp.sum((pred_cls == t).astype(jnp.float32))
    total = jnp.float32(t.shape[0])
    dice = 2.0 * correct / (2.0 * correct + 2.0 * (total - correct))
    return ce_weight * ce + dice_weight * dice


if __name__ == "__main__":
    key = jax.random.PRNGKey(0)
    k1, k2, k3 = jax.random.split(key, 3)

    N, C, H, W = 2, NUM_CLASSES, 16, 16
    pred = jax.random.normal(k1, (N, C, H, W), dtype=jnp.float32)
    target = jax.random.randint(k2, (N, H, W), 0, C, dtype=jnp.int32)
    ce_class_weights = jax.random.uniform(k3, (C,), dtype=jnp.float32,
                                          minval=0.5, maxval=1.5)

    out = ce_and_dice_loss(pred, target, ce_class_weights)
    out = jax.block_until_ready(out)

    ref = _reference(pred, target, ce_class_weights)
    assert jnp.allclose(out, ref, rtol=1e-5, atol=1e-5), (out, ref)

    print("KERNEL_OK")
</pallas_src>

<mosaic_0001>
module attributes {stable_mosaic.version = 11 : i64} {
  func.func @_ce_dice_kernel(%arg0: i32, %arg1: i32, %arg2: i32, %arg3: memref<1x1x256xi32, #tpu.memory_space<vmem>>, %arg4: memref<1x49x256xf32, #tpu.memory_space<vmem>>, %arg5: memref<49x1xf32, #tpu.memory_space<vmem>>, %arg6: memref<1x1x256xf32, #tpu.memory_space<vmem>>, %arg7: memref<1x1x256xf32, #tpu.memory_space<vmem>>, %arg8: memref<1x1x256xf32, #tpu.memory_space<vmem>>) attributes {dimension_semantics = [#tpu.dimension_semantics<parallel>, #tpu.dimension_semantics<arbitrary>, #tpu.dimension_semantics<arbitrary>], iteration_bounds = array<i64: 2, 2, 1>, scalar_prefetch = 0 : i64, scratch_operands = 0 : i64, tpu.core_type = #tpu.core_type<tc>, window_params = [{transform_indices = @transform_0, window_bounds = array<i64: 1, 1, 256>}, {transform_indices = @transform_1, window_bounds = array<i64: 1, 49, 256>}, {pipeline_mode = #tpu.pipeline_mode<synchronous>, transform_indices = @transform_2, window_bounds = array<i64: 49, 1>}, {transform_indices = @transform_3, window_bounds = array<i64: 1, 1, 256>}, {transform_indices = @transform_4, window_bounds = array<i64: 1, 1, 256>}, {transform_indices = @transform_5, window_bounds = array<i64: 1, 1, 256>}]} {
    %c0_i32 = arith.constant 0 : i32
    %0 = arith.cmpi eq, %arg1, %c0_i32 : i32
    %c0_i32_0 = arith.constant 0 : i32
    %1 = arith.cmpi eq, %arg2, %c0_i32_0 : i32
    %2 = arith.andi %0, %1 : i1
    %3 = arith.extui %2 : i1 to i32
    %c0_i32_1 = arith.constant 0 : i32
    %4 = arith.cmpi ne, %3, %c0_i32_1 : i32
    scf.if %4 {
      %cst_33 = arith.constant 0.000000e+00 : f32
      %65 = vector.broadcast %cst_33 : f32 to vector<1x1x256xf32>
      %c0_34 = arith.constant 0 : index
      %c0_35 = arith.constant 0 : index
      %c0_36 = arith.constant 0 : index
      %66 = vector.load %arg6[%c0_34, %c0_35, %c0_36] : memref<1x1x256xf32, #tpu.memory_space<vmem>>, vector<1x1x256xf32>
      tpu.vector_store %arg6[%c0_34, %c0_35, %c0_36], %65 {strides = array<i32>} : memref<1x1x256xf32, #tpu.memory_space<vmem>>, vector<1x1x256xf32>,
      %cst_37 = arith.constant 0.000000e+00 : f32
      %67 = vector.broadcast %cst_37 : f32 to vector<1x1x256xf32>
      %c0_38 = arith.constant 0 : index
      %c0_39 = arith.constant 0 : index
      %c0_40 = arith.constant 0 : index
      %68 = vector.load %arg7[%c0_38, %c0_39, %c0_40] : memref<1x1x256xf32, #tpu.memory_space<vmem>>, vector<1x1x256xf32>
      tpu.vector_store %arg7[%c0_38, %c0_39, %c0_40], %67 {strides = array<i32>} : memref<1x1x256xf32, #tpu.memory_space<vmem>>, vector<1x1x256xf32>,
      %cst_41 = arith.constant 0.000000e+00 : f32
      %69 = vector.broadcast %cst_41 : f32 to vector<1x1x256xf32>
      %c0_42 = arith.constant 0 : index
      %c0_43 = arith.constant 0 : index
      %c0_44 = arith.constant 0 : index
      %70 = vector.load %arg8[%c0_42, %c0_43, %c0_44] : memref<1x1x256xf32, #tpu.memory_space<vmem>>, vector<1x1x256xf32>
      tpu.vector_store %arg8[%c0_42, %c0_43, %c0_44], %69 {strides = array<i32>} : memref<1x1x256xf32, #tpu.memory_space<vmem>>, vector<1x1x256xf32>,
    } else {
    }
    %c0 = arith.constant 0 : index
    %c0_2 = arith.constant 0 : index
    %c0_3 = arith.constant 0 : index
    %5 = vector.load %arg4[%c0, %c0_2, %c0_3] : memref<1x49x256xf32, #tpu.memory_space<vmem>>, vector<1x49x256xf32>
    %6 = vector.shape_cast %5 : vector<1x49x256xf32> to vector<49x256xf32>
    %c0_4 = arith.constant 0 : index
    %c0_5 = arith.constant 0 : index
    %c0_6 = arith.constant 0 : index
    %7 = vector.load %arg3[%c0_4, %c0_5, %c0_6] : memref<1x1x256xi32, #tpu.memory_space<vmem>>, vector<1x1x256xi32>
    %8 = vector.shape_cast %7 : vector<1x1x256xi32> to vector<1x256xi32>
    %c1_i32 = arith.constant 1 : i32
    %9 = arith.muli %arg0, %c1_i32 : i32
    %10 = arith.addi %9, %arg2 : i32
    %11 = tpu.iota {dimensions = array<i32: 1>} : vector<1x256xi32>
    %c256_i32 = arith.constant 256 : i32
    %12 = arith.muli %10, %c256_i32 : i32
    %13 = vector.broadcast %12 : i32 to vector<1x256xi32>
    %14 = arith.addi %13, %11 : vector<1x256xi32>
    %c256_i32_7 = arith.constant 256 : i32
    %15 = vector.broadcast %c256_i32_7 : i32 to vector<1x256xi32>
    %16 = arith.cmpi slt, %14, %15 : vector<1x256xi32>
    %cst = arith.constant dense<0xFF800000> : vector<256xf32>
    %17 = vector.multi_reduction <maximumf>, %6, %cst [0] : vector<49x256xf32> to vector<256xf32>
    %18 = vector.shape_cast %17 : vector<256xf32> to vector<1x256xf32>
    %19 = vector.broadcast %18 : vector<1x256xf32> to vector<49x256xf32>
    %20 = arith.subf %6, %19 : vector<49x256xf32>
    %21 = math.exp %20 : vector<49x256xf32>
    %cst_8 = arith.constant dense<0.000000e+00> : vector<256xf32>
    %22 = vector.multi_reduction <add>, %21, %cst_8 [0] : vector<49x256xf32> to vector<256xf32>
    %23 = vector.shape_cast %22 : vector<256xf32> to vector<1x256xf32>
    %24 = math.log %23 : vector<1x256xf32>
    %25 = tpu.iota {dimensions = array<i32: 0>} : vector<49x256xi32>
    %26 = vector.broadcast %8 : vector<1x256xi32> to vector<49x256xi32>
    %27 = arith.cmpi eq, %25, %26 : vector<49x256xi32>
    %28 = arith.extui %27 : vector<49x256xi1> to vector<49x256xi32>
    %29 = arith.sitofp %28 : vector<49x256xi32> to vector<49x256xf32>
    %30 = arith.mulf %29, %20 : vector<49x256xf32>
    %cst_9 = arith.constant dense<0.000000e+00> : vector<256xf32>
    %31 = vector.multi_reduction <add>, %30, %cst_9 [0] : vector<49x256xf32> to vector<256xf32>
    %32 = vector.shape_cast %31 : vector<256xf32> to vector<1x256xf32>
    %c0_10 = arith.constant 0 : index
    %c0_11 = arith.constant 0 : index
    %33 = vector.load %arg5[%c0_10, %c0_11] : memref<49x1xf32, #tpu.memory_space<vmem>>, vector<49x1xf32>
    %34 = vector.broadcast %33 : vector<49x1xf32> to vector<49x256xf32>
    %35 = arith.mulf %29, %34 : vector<49x256xf32>
    %cst_12 = arith.constant dense<0.000000e+00> : vector<256xf32>
    %36 = vector.multi_reduction <add>, %35, %cst_12 [0] : vector<49x256xf32> to vector<256xf32>
    %37 = vector.shape_cast %36 : vector<256xf32> to vector<1x256xf32>
    %38 = arith.subf %24, %32 : vector<1x256xf32>
    %39 = arith.mulf %37, %38 : vector<1x256xf32>
    %40 = vector.broadcast %18 : vector<1x256xf32> to vector<49x256xf32>
    %41 = arith.cmpf oeq, %6, %40 : vector<49x256xf32>
    %c49_i32 = arith.constant 49 : i32
    %42 = vector.broadcast %c49_i32 : i32 to vector<49x256xi32>
    %43 = arith.select %41, %25, %42 : vector<49x256xi1>, vector<49x256xi32>
    %cst_13 = arith.constant dense<2147483647> : vector<256xi32>
    %44 = vector.multi_reduction <minsi>, %43, %cst_13 [0] : vector<49x256xi32> to vector<256xi32>
    %45 = vector.shape_cast %44 : vector<256xi32> to vector<1x256xi32>
    %46 = arith.cmpi eq, %45, %8 : vector<1x256xi32>
    %47 = arith.extui %46 : vector<1x256xi1> to vector<1x256xi32>
    %48 = arith.sitofp %47 : vector<1x256xi32> to vector<1x256xf32>
    %cst_14 = arith.constant 0.000000e+00 : f32
    %49 = vector.broadcast %cst_14 : f32 to vector<1x256xf32>
    %c0_15 = arith.constant 0 : index
    %c0_16 = arith.constant 0 : index
    %c0_17 = arith.constant 0 : index
    %50 = vector.load %arg6[%c0_15, %c0_16, %c0_17] : memref<1x1x256xf32, #tpu.memory_space<vmem>>, vector<1x1x256xf32>
    %51 = arith.select %16, %39, %49 : vector<1x256xi1>, vector<1x256xf32>
    %52 = vector.shape_cast %51 : vector<1x256xf32> to vector<1x1x256xf32>
    %53 = arith.addf %50, %52 : vector<1x1x256xf32>
    %c0_18 = arith.constant 0 : index
    %c0_19 = arith.constant 0 : index
    %c0_20 = arith.constant 0 : index
    %54 = vector.load %arg6[%c0_18, %c0_19, %c0_20] : memref<1x1x256xf32, #tpu.memory_space<vmem>>, vector<1x1x256xf32>
    tpu.vector_store %arg6[%c0_18, %c0_19, %c0_20], %53 {strides = array<i32>} : memref<1x1x256xf32, #tpu.memory_space<vmem>>, vector<1x1x256xf32>,
    %c0_21 = arith.constant 0 : index
    %c0_22 = arith.constant 0 : index
    %c0_23 = arith.constant 0 : index
    %55 = vector.load %arg7[%c0_21, %c0_22, %c0_23] : memref<1x1x256xf32, #tpu.memory_space<vmem>>, vector<1x1x256xf32>
    %56 = arith.select %16, %37, %49 : vector<1x256xi1>, vector<1x256xf32>
    %57 = vector.shape_cast %56 : vector<1x256xf32> to vector<1x1x256xf32>
    %58 = arith.addf %55, %57 : vector<1x1x256xf32>
    %c0_24 = arith.constant 0 : index
    %c0_25 = arith.constant 0 : index
    %c0_26 = arith.constant 0 : index
    %59 = vector.load %arg7[%c0_24, %c0_25, %c0_26] : memref<1x1x256xf32, #tpu.memory_space<vmem>>, vector<1x1x256xf32>
    tpu.vector_store %arg7[%c0_24, %c0_25, %c0_26], %58 {strides = array<i32>} : memref<1x1x256xf32, #tpu.memory_space<vmem>>, vector<1x1x256xf32>,
    %c0_27 = arith.constant 0 : index
    %c0_28 = arith.constant 0 : index
    %c0_29 = arith.constant 0 : index
    %60 = vector.load %arg8[%c0_27, %c0_28, %c0_29] : memref<1x1x256xf32, #tpu.memory_space<vmem>>, vector<1x1x256xf32>
    %61 = arith.select %16, %48, %49 : vector<1x256xi1>, vector<1x256xf32>
    %62 = vector.shape_cast %61 : vector<1x256xf32> to vector<1x1x256xf32>
    %63 = arith.addf %60, %62 : vector<1x1x256xf32>
    %c0_30 = arith.constant 0 : index
    %c0_31 = arith.constant 0 : index
    %c0_32 = arith.constant 0 : index
    %64 = vector.load %arg8[%c0_30, %c0_31, %c0_32] : memref<1x1x256xf32, #tpu.memory_space<vmem>>, vector<1x1x256xf32>
    tpu.vector_store %arg8[%c0_30, %c0_31, %c0_32], %63 {strides = array<i32>} : memref<1x1x256xf32, #tpu.memory_space<vmem>>, vector<1x1x256xf32>,
    return
  }
  func.func @transform_0(%arg0: i32, %arg1: i32, %arg2: i32) -> (i32, i32, i32) {
    %c1_i32 = arith.constant 1 : i32
    %0 = arith.muli %arg0, %c1_i32 : i32
    %1 = arith.addi %0, %arg2 : i32
    %c0_i32 = arith.constant 0 : i32
    %2 = arith.minsi %1, %c0_i32 : i32
    %c0_i32_0 = arith.constant 0 : i32
    %c0_i32_1 = arith.constant 0 : i32
    return %arg1, %c0_i32_0, %2 : i32, i32, i32
  }
  func.func @transform_1(%arg0: i32, %arg1: i32, %arg2: i32) -> (i32, i32, i32) {
    %c1_i32 = arith.constant 1 : i32
    %0 = arith.muli %arg0, %c1_i32 : i32
    %1 = arith.addi %0, %arg2 : i32
    %c0_i32 = arith.constant 0 : i32
    %2 = arith.minsi %1, %c0_i32 : i32
    %c0_i32_0 = arith.constant 0 : i32
    %c0_i32_1 = arith.constant 0 : i32
    return %arg1, %c0_i32_0, %2 : i32, i32, i32
  }
  func.func @transform_2(%arg0: i32, %arg1: i32, %arg2: i32) -> (i32, i32) {
    %c0_i32 = arith.constant 0 : i32
    %c0_i32_0 = arith.constant 0 : i32
    %c0_i32_1 = arith.constant 0 : i32
    return %c0_i32, %c0_i32_0 : i32, i32
  }
  func.func @transform_3(%arg0: i32, %arg1: i32, %arg2: i32) -> (i32, i32, i32) {
    %c0_i32 = arith.constant 0 : i32
    %c0_i32_0 = arith.constant 0 : i32
    %c0_i32_1 = arith.constant 0 : i32
    return %arg0, %c0_i32, %c0_i32_0 : i32, i32, i32
  }
  func.func @transform_4(%arg0: i32, %arg1: i32, %arg2: i32) -> (i32, i32, i32) {
    %c0_i32 = arith.constant 0 : i32
    %c0_i32_0 = arith.constant 0 : i32
    %c0_i32_1 = arith.constant 0 : i32
    return %arg0, %c0_i32, %c0_i32_0 : i32, i32, i32
  }
  func.func @transform_5(%arg0: i32, %arg1: i32, %arg2: i32) -> (i32, i32, i32) {
    %c0_i32 = arith.constant 0 : i32
    %c0_i32_0 = arith.constant 0 : i32
    %c0_i32_1 = arith.constant 0 : i32
    return %arg0, %c0_i32, %c0_i32_0 : i32, i32, i32
  }
}

</mosaic_0001>

<llo_original>
// kernel: ce_and_dice_loss.1
$region0: #{ce_and_dice_loss.1}
  #allocation0 [shape = 'u32[]', space=smem, size = 0x4, offset = 0x4, fixed_abs, tag = 'smem constant byte address 0x4 - core index']
  #allocation1 [shape = 'u32[144,128]{1,0:T(1,128)}', space=vmem, size = 0x12000, scoped, tag = 'internal scratch']
  %s0 = inlined_call_operand.vmem [shape: s32[2,1,256], index: 0, kind: input, shape index: {}]
  %s1 = inlined_call_operand.vmem [shape: f32[2,49,256], index: 1, kind: input, shape index: {}]
  %s2 = inlined_call_operand.vmem [shape: f32[49,1], index: 2, kind: input, shape index: {}]
  %s3 = inlined_call_operand.vmem [shape: f32[2,1,256], index: 3, kind: output, shape index: {0}]
  %s4 = inlined_call_operand.vmem [shape: f32[2,1,256], index: 4, kind: output, shape index: {1}]
  %s5 = inlined_call_operand.vmem [shape: f32[2,1,256], index: 5, kind: output, shape index: {2}]
  %6 = xla_tuple %s3, %s4, %s5
  %s7 = sld [smem:[#allocation0]]
  $region65: #{ce_and_dice_loss.1} parent=0
    _
  %s9 = ssub.s32 1, %s7
  %s10 = scalar_select 0, %s9, %s7
  loop: start=0, step=1, limit=6
  $region2: #{ce_and_dice_loss.1} parent=0 // loop_pre_header
    _
  $region3: #{ce_and_dice_loss.1} parent=0 // loop_header
    %s12 = sphi 0, %s16
    %p13 = scmp.ge.s32.totalorder %s12, 6
    %s19 = sphi 0, %s38
    %s20 = sphi 0, %s34
    %s21 = sphi 0, %s30
    %s22 = sphi 0, %s19
    %s23 = sphi 0, %s20
    %s24 = sphi 0, %s21
    %s25 = sphi 0, %s22
    %s26 = sphi 0, %s23
    %s27 = sphi 0, %s24
    %s49 = sphi 0, %s51
    %s52 = sphi 0, %s49
    %s53 = sphi 0, %s52
    %s69 = sphi 0, %s53
    %s83 = sphi 0, %s85
    %s86 = sphi 0, %s83
    %s87 = sphi 0, %s86
    %s103 = sphi 0, %s87
    %s107 = sphi 0, %s107
    %s109 = sphi 0, %s107
    %s110 = sphi 0, %s109
    %s124 = sphi 0, %s110
    %s130 = sphi 0, %s132
    %s133 = sphi 0, %s130
    %s134 = sphi 0, %s133
    %s150 = sphi 0, %s134
    %s156 = sphi 0, %s158
    %s159 = sphi 0, %s156
    %s160 = sphi 0, %s159
    %s176 = sphi 0, %s160
    %s182 = sphi 0, %s184
    %s185 = sphi 0, %s182
    %s186 = sphi 0, %s185
    %s202 = sphi 0, %s186
  $region4: #{ce_and_dice_loss.1} parent=0 // loop_header_branch
    %15 = sbr.rel (%p13) target = $region8
  $region5: #{ce_and_dice_loss.1} parent=0 // loop_body
    %s17 = ssub.s32 %s12, 1
    %s18 = ssub.s32 %s12, 2
    %s28 = sadd.s32 1, %s21
    %p29 = scmp.ge.s32.totalorder %s28, 1
    %s30 = scalar_select %p29, 0, %s28
    %s31 = sadd.s32 1, %s20
    %s32 = scalar_select %p29, %s31, %s20
    %p33 = scmp.ge.s32.totalorder %s32, 2
    %s34 = scalar_select %p33, 0, %s32
    %s35 = sadd.s32 1, %s19
    %s36 = scalar_select %p33, %s35, %s19
    %p37 = scmp.ge.s32.totalorder %s36, 2
    %s38 = scalar_select %p37, 0, %s36
    %s39 = sadd.s32 %s19, %s21
    %p40 = scmp.lt.s32.totalorder %s39, 0
    %s41 = scalar_select %p40, %s39, 0
    %s42 = sadd.s32 %s38, %s30
    %p43 = scmp.lt.s32.totalorder %s42, 0
    %s44 = scalar_select %p43, %s42, 0
    %s45 = ssub.s32 %s20, %s34
    %s46 = ssub.s32 %s41, %s44
    %s47 = sor.u32 %s45, %s46
    %p48 = scmp.eq.s32.totalorder %s47, 0
    %s50 = sadd.s32 %s49, 1
    %s51 = scalar_select %p48, %s49, %s50
    %p54 = pneg %p48
    %p55 = scmp.eq.s32.totalorder %s12, 3
    %p56 = por %p54, %p55
    %p57 = scmp.ne.s32.totalorder %s49, %s52
    %p58 = scmp.eq.s32.totalorder %s12, 0
    %p59 = por %p57, %p58
    %p60 = scmp.ne.s32.totalorder %s49, %s52
    %p61 = scmp.eq.s32.totalorder %s17, 3
    %p62 = por %p60, %p61
    %p63 = scmp.ne.s32.totalorder %s52, %s53
    %p64 = scmp.eq.s32.totalorder %s17, 0
    %p65 = por %p63, %p64
    %p66 = scmp.ne.s32.totalorder %s52, %s53
    %p67 = scmp.eq.s32.totalorder %s18, 3
    %p68 = por %p66, %p67
    %p70 = scmp.ne.s32.totalorder %s53, %s69
    %p71 = scmp.eq.s32.totalorder %s18, 0
    %p72 = por %p70, %p71
    %s73 = sadd.s32 %s19, %s21
    %p74 = scmp.lt.s32.totalorder %s73, 0
    %s75 = scalar_select %p74, %s73, 0
    %s76 = sadd.s32 %s38, %s30
    %p77 = scmp.lt.s32.totalorder %s76, 0
    %s78 = scalar_select %p77, %s76, 0
    %s79 = ssub.s32 %s20, %s34
    %s80 = ssub.s32 %s75, %s78
    %s81 = sor.u32 %s79, %s80
    %p82 = scmp.eq.s32.totalorder %s81, 0
    %s84 = sadd.s32 %s83, 1
    %s85 = scalar_select %p82, %s83, %s84
    %p88 = pneg %p82
    %p89 = scmp.eq.s32.totalorder %s12, 3
    %p90 = por %p88, %p89
    %p91 = scmp.ne.s32.totalorder %s83, %s86
    %p92 = scmp.eq.s32.totalorder %s12, 0
    %p93 = por %p91, %p92
    %p94 = scmp.ne.s32.totalorder %s83, %s86
    %p95 = scmp.eq.s32.totalorder %s17, 3
    %p96 = por %p94, %p95
    %p97 = scmp.ne.s32.totalorder %s86, %s87
    %p98 = scmp.eq.s32.totalorder %s17, 0
    %p99 = por %p97, %p98
    %p100 = scmp.ne.s32.totalorder %s86, %s87
    %p101 = scmp.eq.s32.totalorder %s18, 3
    %p102 = por %p100, %p101
    %p104 = scmp.ne.s32.totalorder %s87, %s103
    %p105 = scmp.eq.s32.totalorder %s18, 0
    %p106 = por %p104, %p105
    %s108 = sadd.s32 %s107, 1
    %p111 = scmp.eq.s32.totalorder %s12, 3
    %p112 = scmp.ne.s32.totalorder %s107, %s109
    %p113 = scmp.eq.s32.totalorder %s12, 0
    %p114 = por %p112, %p113
    %p115 = scmp.ne.s32.totalorder %s107, %s109
    %p116 = scmp.eq.s32.totalorder %s17, 3
    %p117 = por %p115, %p116
    %p118 = scmp.ne.s32.totalorder %s109, %s110
    %p119 = scmp.eq.s32.totalorder %s17, 0
    %p120 = por %p118, %p119
    %p121 = scmp.ne.s32.totalorder %s109, %s110
    %p122 = scmp.eq.s32.totalorder %s18, 3
    %p123 = por %p121, %p122
    %p125 = scmp.ne.s32.totalorder %s110, %s124
    %p126 = scmp.eq.s32.totalorder %s18, 0
    %p127 = por %p125, %p126
    %s128 = ssub.s32 %s19, %s38
    %p129 = scmp.eq.s32.totalorder %s128, 0
    %s131 = sadd.s32 %s130, 1
    %s132 = scalar_select %p129, %s130, %s131
    %p135 = pneg %p129
    %p136 = scmp.eq.s32.totalorder %s12, 3
    %p137 = por %p135, %p136
    %p138 = scmp.ne.s32.totalorder %s130, %s133
    %p139 = scmp.eq.s32.totalorder %s12, 0
    %p140 = por %p138, %p139
    %p141 = scmp.ne.s32.totalorder %s130, %s133
    %p142 = scmp.eq.s32.totalorder %s17, 3
    %p143 = por %p141, %p142
    %p144 = scmp.ne.s32.totalorder %s133, %s134
    %p145 = scmp.eq.s32.totalorder %s17, 0
    %p146 = por %p144, %p145
    %p147 = scmp.ne.s32.totalorder %s133, %s134
    %p148 = scmp.eq.s32.totalorder %s18, 3
    %p149 = por %p147, %p148
    %p151 = scmp.ne.s32.totalorder %s134, %s150
    %p152 = scmp.eq.s32.totalorder %s18, 0
    %p153 = por %p151, %p152
    %s154 = ssub.s32 %s19, %s38
    %p155 = scmp.eq.s32.totalorder %s154, 0
    %s157 = sadd.s32 %s156, 1
    %s158 = scalar_select %p155, %s156, %s157
    %p161 = pneg %p155
    %p162 = scmp.eq.s32.totalorder %s12, 3
    %p163 = por %p161, %p162
    %p164 = scmp.ne.s32.totalorder %s156, %s159
    %p165 = scmp.eq.s32.totalorder %s12, 0
    %p166 = por %p164, %p165
    %p167 = scmp.ne.s32.totalorder %s156, %s159
    %p168 = scmp.eq.s32.totalorder %s17, 3
    %p169 = por %p167, %p168
    %p170 = scmp.ne.s32.totalorder %s159, %s160
    %p171 = scmp.eq.s32.totalorder %s17, 0
    %p172 = por %p170, %p171
    %p173 = scmp.ne.s32.totalorder %s159, %s160
    %p174 = scmp.eq.s32.totalorder %s18, 3
    %p175 = por %p173, %p174
    %p177 = scmp.ne.s32.totalorder %s160, %s176
    %p178 = scmp.eq.s32.totalorder %s18, 0
    %p179 = por %p177, %p178
    %s180 = ssub.s32 %s19, %s38
    %p181 = scmp.eq.s32.totalorder %s180, 0
    %s183 = sadd.s32 %s182, 1
    %s184 = scalar_select %p181, %s182, %s183
    %p187 = pneg %p181
    %p188 = scmp.eq.s32.totalorder %s12, 3
    %p189 = por %p187, %p188
    %p190 = scmp.ne.s32.totalorder %s182, %s185
    %p191 = scmp.eq.s32.totalorder %s12, 0
    %p192 = por %p190, %p191
    %p193 = scmp.ne.s32.totalorder %s182, %s185
    %p194 = scmp.eq.s32.totalorder %s17, 3
    %p195 = por %p193, %p194
    %p196 = scmp.ne.s32.totalorder %s185, %s186
    %p197 = scmp.eq.s32.totalorder %s17, 0
    %p198 = por %p196, %p197
    %p199 = scmp.ne.s32.totalorder %s185, %s186
    %p200 = scmp.eq.s32.totalorder %s18, 3
    %p201 = por %p199, %p200
    %p203 = scmp.ne.s32.totalorder %s186, %s202
    %p204 = scmp.eq.s32.totalorder %s18, 0
    %p205 = por %p203, %p204
    %p206 = scmp.le.s32.totalorder 1, %s12
    %p207 = scmp.lt.s32.totalorder %s12, 5
    %p208 = pnand %p206, %p207
    %p209 = pneg %p208
    // Predicated region
    $region9: #{ce_and_dice_loss.1} parent=5 // pred_check
      _
    $region10: #{ce_and_dice_loss.1} parent=5 // pred_check_branch
      %211 = sbr.rel (%p208) target = $region12
    $region11: #{ce_and_dice_loss.1} parent=5 // pred_region
      %s212 = ssub.s32 %s12, 1
      // Predicated region
      $region13: #{ce_and_dice_loss.1} parent=11 // pred_check
        %p213 = pneg %p120
      $region14: #{ce_and_dice_loss.1} parent=11 // pred_check_branch
        %215 = sbr.rel (%p213) target = $region16
      $region15: #{ce_and_dice_loss.1} parent=11 // pred_region
        _
      $region16: #{ce_and_dice_loss.1} parent=11 // pred_fallthru
        _
    $region12: #{ce_and_dice_loss.1} parent=5 // pred_fallthru
      _
    %p216 = scmp.lt.s32.totalorder %s12, 4
    // Predicated region
    $region17: #{ce_and_dice_loss.1} parent=5 // pred_check
      %p217 = pneg %p216
    $region18: #{ce_and_dice_loss.1} parent=5 // pred_check_branch
      %219 = sbr.rel (%p217) target = $region20
    $region19: #{ce_and_dice_loss.1} parent=5 // pred_region
      // Predicated region
      $region21: #{ce_and_dice_loss.1} parent=19 // pred_check
        %p220 = pneg %p59
      $region22: #{ce_and_dice_loss.1} parent=19 // pred_check_branch
        %222 = sbr.rel (%p220) target = $region24
      $region23: #{ce_and_dice_loss.1} parent=19 // pred_region
        %s223 = sadd.s32 %s19, %s21
        %p224 = scmp.lt.s32.totalorder %s223, 0
        %s225 = scalar_select %p224, %s223, 0
        %s226 = smul.u32 2, %s225
        %p227 = scmp.lt.s32.totalorder %s20, 1
        %s228 = scalar_select %p227, %s20, 1
        %p229 = scmp.lt.s32.totalorder %s226, 1
        %s230 = scalar_select %p229, %s226, 1
        %s231 = smul.addr %s228, 2
        %s232 = sadd.s32 %s230, %s231
        %s233 = scalar_lea.vmem %s0, %s232
        %s234 = sadd.s32 %s19, %s21
        %p235 = scmp.lt.s32.totalorder %s234, 0
        %s236 = scalar_select %p235, %s234, 0
        %s237 = smul.u32 2, %s236
      $region24: #{ce_and_dice_loss.1} parent=19 // pred_fallthru
        _
      // Predicated region
      $region25: #{ce_and_dice_loss.1} parent=19 // pred_check
        %p238 = pneg %p93
      $region26: #{ce_and_dice_loss.1} parent=19 // pred_check_branch
        %240 = sbr.rel (%p238) target = $region28
      $region27: #{ce_and_dice_loss.1} parent=19 // pred_region
        %s241 = sadd.s32 %s19, %s21
        %p242 = scmp.lt.s32.totalorder %s241, 0
        %s243 = scalar_select %p242, %s241, 0
        %s244 = smul.u32 2, %s243
        %p245 = scmp.lt.s32.totalorder %s20, 1
        %s246 = scalar_select %p245, %s20, 1
        %p247 = scmp.lt.s32.totalorder %s244, 1
        %s248 = scalar_select %p247, %s244, 1
        %s249 = smul.addr %s246, 14
        %s250 = sadd.s32 %s248, %s249
        %s251 = smul.addr %s250, 8
        %s252 = scalar_lea.vmem %s1, %s251
        %s253 = sadd.s32 %s19, %s21
        %p254 = scmp.lt.s32.totalorder %s253, 0
        %s255 = scalar_select %p254, %s253, 0
        %s256 = smul.u32 2, %s255
      $region28: #{ce_and_dice_loss.1} parent=19 // pred_fallthru
        _
    $region20: #{ce_and_dice_loss.1} parent=5 // pred_fallthru
      _
    %p257 = scmp.le.s32.totalorder 1, %s12
    %p258 = scmp.lt.s32.totalorder %s12, 5
    %p259 = pnand %p257, %p258
    %p260 = pneg %p259
    // Predicated region
    $region29: #{ce_and_dice_loss.1} parent=5 // pred_check
      _
    $region30: #{ce_and_dice_loss.1} parent=5 // pred_check_branch
      %262 = sbr.rel (%p259) target = $region32
    $region31: #{ce_and_dice_loss.1} parent=5 // pred_region
      %s263 = ssub.s32 %s12, 1
      %s264 = sadd.s32 %s22, %s24
      %p265 = scmp.lt.s32.totalorder %s264, 0
      %s266 = scalar_select %p265, %s264, 0
      %s267 = smul.u32 2, %s266
      %p268 = scmp.lt.s32.totalorder %s23, 1
      %s269 = scalar_select %p268, %s23, 1
      %p270 = scmp.lt.s32.totalorder %s267, 1
      %s271 = scalar_select %p270, %s267, 1
      %s272 = smul.addr %s269, 2
      %s273 = sadd.s32 %s271, %s272
      %s274 = scalar_lea.vmem %s0, %s273
      %p275 = pneg %p65
      %p276 = pneg %p62
      %s277 = sadd.s32 %s22, %s24
      %p278 = scmp.lt.s32.totalorder %s277, 0
      %s279 = scalar_select %p278, %s277, 0
      %s280 = smul.u32 2, %s279
      %p281 = scmp.lt.s32.totalorder %s23, 1
      %s282 = scalar_select %p281, %s23, 1
      %p283 = scmp.lt.s32.totalorder %s280, 1
      %s284 = scalar_select %p283, %s280, 1
      %s285 = smul.addr %s282, 14
      %s286 = sadd.s32 %s284, %s285
      %s287 = smul.addr %s286, 8
      %s288 = scalar_lea.vmem %s1, %s287
      %p289 = pneg %p99
      %p290 = pneg %p96
      %p291 = pneg %p120
      %p292 = pneg %p117
      %p293 = pneg %p146
      %p294 = pneg %p143
      %p295 = scmp.lt.s32.totalorder %s22, 1
      %s296 = scalar_select %p295, %s22, 1
      %s297 = smul.addr %s296, 2
      %s298 = scalar_lea.vmem %s3, %s297
      %p299 = pneg %p172
      %p300 = pneg %p169
      %p301 = scmp.lt.s32.totalorder %s22, 1
      %s302 = scalar_select %p301, %s22, 1
      %s303 = smul.addr %s302, 2
      %s304 = scalar_lea.vmem %s4, %s303
      %p305 = pneg %p198
      %p306 = pneg %p195
      %p307 = scmp.lt.s32.totalorder %s22, 1
      %s308 = scalar_select %p307, %s22, 1
      %s309 = smul.addr %s308, 2
      %s310 = scalar_lea.vmem %s5, %s309
      %s311 = sadd.s32 %s22, %s24
      %p312 = scmp.lt.s32.totalorder %s311, 0
      %s313 = scalar_select %p312, %s311, 0
      %s314 = smul.u32 2, %s313
      %p315 = scmp.lt.s32.totalorder %s23, 1
      %s316 = scalar_select %p315, %s23, 1
      %p317 = scmp.lt.s32.totalorder %s314, 1
      %s318 = scalar_select %p317, %s314, 1
      %s319 = smul.addr %s316, 2
      %s320 = sadd.s32 %s318, %s319
      %s321 = scalar_lea.vmem %s0, %s320
      %s322 = sadd.s32 %s22, %s24
      %p323 = scmp.lt.s32.totalorder %s322, 0
      %s324 = scalar_select %p323, %s322, 0
      %s325 = smul.u32 2, %s324
      %s326 = sadd.s32 %s22, %s24
      %p327 = scmp.lt.s32.totalorder %s326, 0
      %s328 = scalar_select %p327, %s326, 0
      %s329 = smul.u32 2, %s328
      %p330 = scmp.lt.s32.totalorder %s23, 1
      %s331 = scalar_select %p330, %s23, 1
      %p332 = scmp.lt.s32.totalorder %s329, 1
      %s333 = scalar_select %p332, %s329, 1
      %s334 = smul.addr %s331, 14
      %s335 = sadd.s32 %s333, %s334
      %s336 = smul.addr %s335, 8
      %s337 = scalar_lea.vmem %s1, %s336
      %s338 = sadd.s32 %s22, %s24
      %p339 = scmp.lt.s32.totalorder %s338, 0
      %s340 = scalar_select %p339, %s338, 0
      %s341 = smul.u32 2, %s340
      %p342 = scmp.lt.s32.totalorder %s22, 1
      %s343 = scalar_select %p342, %s22, 1
      %s344 = smul.addr %s343, 2
      %s345 = scalar_lea.vmem %s3, %s344
      %p346 = scmp.lt.s32.totalorder %s22, 1
      %s347 = scalar_select %p346, %s22, 1
      %s348 = smul.addr %s347, 2
      %s349 = scalar_lea.vmem %s4, %s348
      %p350 = scmp.lt.s32.totalorder %s22, 1
      %s351 = scalar_select %p350, %s22, 1
      %s352 = smul.addr %s351, 2
      %s353 = scalar_lea.vmem %s5, %s352
      %p354 = scmp.eq.s32.totalorder %s23, 0
      %p355 = scmp.eq.s32.totalorder %s24, 0
      %p356 = pnand %p354, %p355
      %p357 = pneg %p356
      // Predicated region
      $region33: #{ce_and_dice_loss.1} parent=31 // pred_check
        _
      $region34: #{ce_and_dice_loss.1} parent=31 // pred_check_branch
        %359 = sbr.rel (%p356) target = $region36
      $region35: #{ce_and_dice_loss.1} parent=31 // pred_region
        %v360 = vlaneseq
        %vm361 = vcmp.ge.s32.totalorder %v360, 0
        %vm362 = vcmp.lt.s32.totalorder %v360, 256
        %vm363 = vmand %vm361, %vm362
        %364 = vst.msk [vmem:[%s345] sm:$0x3] %vm363, 0.0
        %365 = vst.msk [vmem:[%s349] sm:$0x3] %vm363, 0.0
        %366 = vst.msk [vmem:[%s353] sm:$0x3] %vm363, 0.0
      $region36: #{ce_and_dice_loss.1} parent=31 // pred_fallthru
        _
      %v367 = vld [vmem:[%s337] sm:$0xff]
      %v368 = vld [vmem:[%s337 + $0x8] sm:$0xff]
      %v369 = vld [vmem:[%s337 + $0x10] sm:$0xff]
      %v370 = vld [vmem:[%s337 + $0x18] sm:$0xff]
      %v371 = vld [vmem:[%s337 + $0x20] sm:$0xff]
      %v372 = vld [vmem:[%s337 + $0x28] sm:$0xff]
      %v373 = vld [vmem:[%s337 + $0x30] sm:$0xff]
      %v374 = vld [vmem:[%s337 + $0x38] sm:$0xff]
      %v375 = vld [vmem:[%s337 + $0x40] sm:$0xff]
      %v376 = vld [vmem:[%s337 + $0x48] sm:$0xff]
      %v377 = vld [vmem:[%s337 + $0x50] sm:$0xff]
      %v378 = vld [vmem:[%s337 + $0x58] sm:$0xff]
      %v379 = vld [vmem:[%s337 + $0x60] sm:$0x1]
      %v380 = vld [vmem:[%s337 + $0x68] sm:$0x1]
      %v381 = vld [vmem:[%s321] sm:$0x3]
      %s382 = sadd.s32 %s22, %s24
      %v383 = vlaneseq
      %v384 = vand.u32 %v383, 127
      %v385 = vadd.s32 %v384, 128
      %s386 = smul.u32 %s382, 256
      %v387 = vstv %s386
      %v388 = vadd.s32 %v387, %v384
      %v389 = vadd.s32 %v387, %v385
      %vm390 = vcmp.lt.s32.totalorder %v388, 256
      %vm391 = vcmp.lt.s32.totalorder %v389, 256
      %v392 = vmax.f32 %v367, %v371
      %v393 = vmax.f32 %v369, %v373
      %v394 = vmax.f32 %v392, %v375
      %v395 = vmax.f32 %v393, %v377
      %vm396 = vcmask 1040384
      %v397 = vsel %vm396, %v379, -inf
      %v398 = vmax.f32 %v394, %v397
      %v399 = vmax.f32 %v398, %v395
      %v400 = vrot.slane %v399, 4
      %v401 = vmax.f32 %v399, %v400
      %v402 = vrot.slane %v401, 2
      %v403 = vmax.f32 %v401, %v402
      %v404 = vrot.slane %v403, 1
      %v405 = vmax.f32 %v403, %v404
      %v406 = vmax.f32 %v368, %v372
      %v407 = vmax.f32 %v370, %v374
      %v408 = vmax.f32 %v406, %v376
      %v409 = vmax.f32 %v407, %v378
      %v410 = vsel %vm396, %v380, -inf
      %v411 = vmax.f32 %v408, %v410
      %v412 = vmax.f32 %v411, %v409
      %v413 = vrot.slane %v412, 4
      %v414 = vmax.f32 %v412, %v413
      %v415 = vrot.slane %v414, 2
      %v416 = vmax.f32 %v414, %v415
      %v417 = vrot.slane %v416, 1
      %v418 = vmax.f32 %v416, %v417
      %v419 = vsub.f32 %v367, %v405
      %v420 = vsub.f32 %v368, %v418
      %v421 = vsub.f32 %v369, %v405
      %v422 = vsub.f32 %v370, %v418
      %v423 = vsub.f32 %v371, %v405
      %v424 = vsub.f32 %v372, %v418
      %v425 = vsub.f32 %v373, %v405
      %v426 = vsub.f32 %v374, %v418
      %v427 = vsub.f32 %v375, %v405
      %v428 = vsub.f32 %v376, %v418
      %v429 = vsub.f32 %v377, %v405
      %v430 = vsub.f32 %v378, %v418
      %v431 = vsub.f32 %v379, %v405
      %v432 = vsub.f32 %v380, %v418
      %v433 = vmul.f32 %v419, 1.442695
      %v434 = vpow.pop %v433
      %v435 = vmul.f32 %v420, 1.442695
      %v436 = vpow.pop %v435
      %v437 = vmul.f32 %v421, 1.442695
      %v438 = vpow.pop %v437
      %v439 = vmul.f32 %v422, 1.442695
      %v440 = vpow.pop %v439
      %v441 = vmul.f32 %v423, 1.442695
      %v442 = vpow.pop %v441
      %v443 = vmul.f32 %v424, 1.442695
      %v444 = vpow.pop %v443
      %v445 = vmul.f32 %v425, 1.442695
      %v446 = vpow.pop %v445
      %v447 = vmul.f32 %v426, 1.442695
      %v448 = vpow.pop %v447
      %v449 = vmul.f32 %v427, 1.442695
      %v450 = vpow.pop %v449
      %v451 = vmul.f32 %v428, 1.442695
      %v452 = vpow.pop %v451
      %v453 = vmul.f32 %v429, 1.442695
      %v454 = vpow.pop %v453
      %v455 = vmul.f32 %v430, 1.442695
      %v456 = vpow.pop %v455
      %v457 = vmul.f32 %v431, 1.442695
      %v458 = vpow.pop %v457
      %v459 = vmul.f32 %v432, 1.442695
      %v460 = vpow.pop %v459
      %v461 = vadd.f32 %v434, %v438
      %v462 = vadd.f32 %v461, %v442
      %v463 = vadd.f32 %v462, %v446
      %v464 = vadd.f32 %v463, %v450
      %v465 = vadd.f32 %v464, %v454
      %v466 = vsel %vm396, %v458, 0.0
      %v467 = vadd.f32 %v465, %v466
      %v468 = vrot.slane %v467, 4
      %v469 = vadd.f32 %v467, %v468
      %v470 = vrot.slane %v469, 2
      %v471 = vadd.f32 %v469, %v470
      %v472 = vrot.slane %v471, 1
      %v473 = vadd.f32 %v471, %v472
      %v474 = vadd.f32 %v436, %v440
      %v475 = vadd.f32 %v474, %v444
      %v476 = vadd.f32 %v475, %v448
      %v477 = vadd.f32 %v476, %v452
      %v478 = vadd.f32 %v477, %v456
      %v479 = vsel %vm396, %v460, 0.0
      %v480 = vadd.f32 %v478, %v479
      %v481 = vrot.slane %v480, 4
      %v482 = vadd.f32 %v480, %v481
      %v483 = vrot.slane %v482, 2
      %v484 = vadd.f32 %v482, %v483
      %v485 = vrot.slane %v484, 1
      %v486 = vadd.f32 %v484, %v485
      %v487 = vlog2.pop %v473
      %v488 = vmul.f32 %v487, 0.6931472
      %v489 = vlog2.pop %v486
      %v490 = vmul.f32 %v489, 0.6931472
      %v491 = vlaneseq
      %v492 = vshrl.u32 %v491, 7
      %v493 = vadd.s32 %v492, 8
      %v494 = vadd.s32 %v492, 16
      %v495 = vadd.s32 %v492, 24
      %v496 = vadd.s32 %v492, 32
      %v497 = vadd.s32 %v492, 40
      %v498 = vadd.s32 %v492, 48
      %v499 = vlaneseq
      %v500 = vshrl.u32 %v499, 7
      %v501 = vsub.s32 0, %v500
      %v502 = vrot.slane %v381, %v501
      %v503 = vlaneseq
      %v504 = vshrl.u32 %v503, 7
      %v505 = vsub.s32 1, %v504
      %v506 = vrot.slane %v381, %v505
      %vm507 = vcmp.eq.s32.totalorder %v492, %v502
      %vm508 = vcmp.eq.s32.totalorder %v492, %v506
      %vm509 = vcmp.eq.s32.totalorder %v493, %v502
      %vm510 = vcmp.eq.s32.totalorder %v493, %v506
      %vm511 = vcmp.eq.s32.totalorder %v494, %v502
      %vm512 = vcmp.eq.s32.totalorder %v494, %v506
      %vm513 = vcmp.eq.s32.totalorder %v495, %v502
      %vm514 = vcmp.eq.s32.totalorder %v495, %v506
      %vm515 = vcmp.eq.s32.totalorder %v496, %v502
      %vm516 = vcmp.eq.s32.totalorder %v496, %v506
      %vm517 = vcmp.eq.s32.totalorder %v497, %v502
      %vm518 = vcmp.eq.s32.totalorder %v497, %v506
      %vm519 = vcmp.eq.s32.totalorder %v498, %v502
      %vm520 = vcmp.eq.s32.totalorder %v498, %v506
      %v521 = vsel %vm507, 1, 0
      %v522 = vsel %vm508, 1, 0
      %v523 = vsel %vm509, 1, 0
      %v524 = vsel %vm510, 1, 0
      %v525 = vsel %vm511, 1, 0
      %v526 = vsel %vm512, 1, 0
      %v527 = vsel %vm513, 1, 0
      %v528 = vsel %vm514, 1, 0
      %v529 = vsel %vm515, 1, 0
      %v530 = vsel %vm516, 1, 0
      %v531 = vsel %vm517, 1, 0
      %v532 = vsel %vm518, 1, 0
      %v533 = vsel %vm519, 1, 0
      %v534 = vsel %vm520, 1, 0
      %v535 = vcvt.s32.f32 %v521
      %v536 = vcvt.s32.f32 %v522
      %v537 = vcvt.s32.f32 %v523
      %v538 = vcvt.s32.f32 %v524
      %v539 = vcvt.s32.f32 %v525
      %v540 = vcvt.s32.f32 %v526
      %v541 = vcvt.s32.f32 %v527
      %v542 = vcvt.s32.f32 %v528
      %v543 = vcvt.s32.f32 %v529
      %v544 = vcvt.s32.f32 %v530
      %v545 = vcvt.s32.f32 %v531
      %v546 = vcvt.s32.f32 %v532
      %v547 = vcvt.s32.f32 %v533
      %v548 = vcvt.s32.f32 %v534
      %v549 = vmul.f32 %v535, %v419
      %v550 = vmul.f32 %v536, %v420
      %v551 = vmul.f32 %v537, %v421
      %v552 = vmul.f32 %v538, %v422
      %v553 = vmul.f32 %v539, %v423
      %v554 = vmul.f32 %v540, %v424
      %v555 = vmul.f32 %v541, %v425
      %v556 = vmul.f32 %v542, %v426
      %v557 = vmul.f32 %v543, %v427
      %v558 = vmul.f32 %v544, %v428
      %v559 = vmul.f32 %v545, %v429
      %v560 = vmul.f32 %v546, %v430
      %v561 = vmul.f32 %v547, %v431
      %v562 = vmul.f32 %v548, %v432
      %v563 = vadd.f32 %v549, %v551
      %v564 = vadd.f32 %v563, %v553
      %v565 = vadd.f32 %v564, %v555
      %v566 = vadd.f32 %v565, %v557
      %v567 = vadd.f32 %v566, %v559
      %v568 = vsel %vm396, %v561, 0.0
      %v569 = vadd.f32 %v567, %v568
      %v570 = vrot.slane %v569, 4
      %v571 = vadd.f32 %v569, %v570
      %v572 = vrot.slane %v571, 2
      %v573 = vadd.f32 %v571, %v572
      %v574 = vrot.slane %v573, 1
      %v575 = vadd.f32 %v573, %v574
      %v576 = vadd.f32 %v550, %v552
      %v577 = vadd.f32 %v576, %v554
      %v578 = vadd.f32 %v577, %v556
      %v579 = vadd.f32 %v578, %v558
      %v580 = vadd.f32 %v579, %v560
      %v581 = vsel %vm396, %v562, 0.0
      %v582 = vadd.f32 %v580, %v581
      %v583 = vrot.slane %v582, 4
      %v584 = vadd.f32 %v582, %v583
      %v585 = vrot.slane %v584, 2
      %v586 = vadd.f32 %v584, %v585
      %v587 = vrot.slane %v586, 1
      %v588 = vadd.f32 %v586, %v587
      %v589 = vld [vmem:[%s2] sm:$0xff]
      %v590 = vld [vmem:[%s2 + $0x8] sm:$0xff]
      %v591 = vld [vmem:[%s2 + $0x10] sm:$0xff]
      %v592 = vld [vmem:[%s2 + $0x18] sm:$0xff]
      %v593 = vld [vmem:[%s2 + $0x20] sm:$0xff]
      %v594 = vld [vmem:[%s2 + $0x28] sm:$0xff]
      %v595 = vld [vmem:[%s2 + $0x30] sm:$0x1]
      %597 = vset.pattern.permute.xlu0 0
      %598 = vperm.xlu0 %597, %v589
      %v599 = vpop.permute.xlu0 %598
      %602 = vset.pattern.permute.xlu0 0
      %603 = vperm.xlu0 %602, %v590
      %v604 = vpop.permute.xlu0 %603
      %607 = vset.pattern.permute.xlu0 0
      %608 = vperm.xlu0 %607, %v591
      %v609 = vpop.permute.xlu0 %608
      %612 = vset.pattern.permute.xlu0 0
      %613 = vperm.xlu0 %612, %v592
      %v614 = vpop.permute.xlu0 %613
      %617 = vset.pattern.permute.xlu0 0
      %618 = vperm.xlu0 %617, %v593
      %v619 = vpop.permute.xlu0 %618
      %622 = vset.pattern.permute.xlu0 0
      %623 = vperm.xlu0 %622, %v594
      %v624 = vpop.permute.xlu0 %623
      %627 = vset.pattern.permute.xlu0 0
      %628 = vperm.xlu0 %627, %v595
      %v629 = vpop.permute.xlu0 %628
      %v631 = vmul.f32 %v535, %v599
      %v632 = vmul.f32 %v536, %v599
      %v633 = vmul.f32 %v537, %v604
      %v634 = vmul.f32 %v538, %v604
      %v635 = vmul.f32 %v539, %v609
      %v636 = vmul.f32 %v540, %v609
      %v637 = vmul.f32 %v541, %v614
      %v638 = vmul.f32 %v542, %v614
      %v639 = vmul.f32 %v543, %v619
      %v640 = vmul.f32 %v544, %v619
      %v641 = vmul.f32 %v545, %v624
      %v642 = vmul.f32 %v546, %v624
      %v643 = vmul.f32 %v547, %v629
      %v644 = vmul.f32 %v548, %v629
      %v645 = vadd.f32 %v631, %v633
      %v646 = vadd.f32 %v645, %v635
      %v647 = vadd.f32 %v646, %v637
      %v648 = vadd.f32 %v647, %v639
      %v649 = vadd.f32 %v648, %v641
      %v650 = vsel %vm396, %v643, 0.0
      %v651 = vadd.f32 %v649, %v650
      %v652 = vrot.slane %v651, 4
      %v653 = vadd.f32 %v651, %v652
      %v654 = vrot.slane %v653, 2
      %v655 = vadd.f32 %v653, %v654
      %v656 = vrot.slane %v655, 1
      %v657 = vadd.f32 %v655, %v656
      %v658 = vadd.f32 %v632, %v634
      %v659 = vadd.f32 %v658, %v636
      %v660 = vadd.f32 %v659, %v638
      %v661 = vadd.f32 %v660, %v640
      %v662 = vadd.f32 %v661, %v642
      %v663 = vsel %vm396, %v644, 0.0
      %v664 = vadd.f32 %v662, %v663
      %v665 = vrot.slane %v664, 4
      %v666 = vadd.f32 %v664, %v665
      %v667 = vrot.slane %v666, 2
      %v668 = vadd.f32 %v666, %v667
      %v669 = vrot.slane %v668, 1
      %v670 = vadd.f32 %v668, %v669
      %v671 = vsub.f32 %v488, %v575
      %v672 = vsub.f32 %v490, %v588
      %v673 = vmul.f32 %v657, %v671
      %v674 = vmul.f32 %v670, %v672
      %vm675 = vcmp.eq.f32.partialorder %v367, %v405
      %vm676 = vcmp.eq.f32.partialorder %v368, %v418
      %vm677 = vcmp.eq.f32.partialorder %v369, %v405
      %vm678 = vcmp.eq.f32.partialorder %v370, %v418
      %vm679 = vcmp.eq.f32.partialorder %v371, %v405
      %vm680 = vcmp.eq.f32.partialorder %v372, %v418
      %vm681 = vcmp.eq.f32.partialorder %v373, %v405
      %vm682 = vcmp.eq.f32.partialorder %v374, %v418
      %vm683 = vcmp.eq.f32.partialorder %v375, %v405
      %vm684 = vcmp.eq.f32.partialorder %v376, %v418
      %vm685 = vcmp.eq.f32.partialorder %v377, %v405
      %vm686 = vcmp.eq.f32.partialorder %v378, %v418
      %vm687 = vcmp.eq.f32.partialorder %v379, %v405
      %vm688 = vcmp.eq.f32.partialorder %v380, %v418
      %v689 = vsel %vm675, %v492, 49
      %v690 = vsel %vm676, %v492, 49
      %v691 = vsel %vm677, %v493, 49
      %v692 = vsel %vm678, %v493, 49
      %v693 = vsel %vm679, %v494, 49
      %v694 = vsel %vm680, %v494, 49
      %v695 = vsel %vm681, %v495, 49
      %v696 = vsel %vm682, %v495, 49
      %v697 = vsel %vm683, %v496, 49
      %v698 = vsel %vm684, %v496, 49
      %v699 = vsel %vm685, %v497, 49
      %v700 = vsel %vm686, %v497, 49
      %v701 = vsel %vm687, %v498, 49
      %v702 = vsel %vm688, %v498, 49
      %vm703 = vcmp.lt.s32.totalorder %v689, %v693
      %v704 = vsel %vm703, %v689, %v693
      %vm705 = vcmp.lt.s32.totalorder %v691, %v695
      %v706 = vsel %vm705, %v691, %v695
      %vm707 = vcmp.lt.s32.totalorder %v704, %v697
      %v708 = vsel %vm707, %v704, %v697
      %vm709 = vcmp.lt.s32.totalorder %v706, %v699
      %v710 = vsel %vm709, %v706, %v699
      %v711 = vsel %vm396, %v701, 2147483647
      %vm712 = vcmp.lt.s32.totalorder %v708, %v711
      %v713 = vsel %vm712, %v708, %v711
      %vm714 = vcmp.lt.s32.totalorder %v713, %v710
      %v715 = vsel %vm714, %v713, %v710
      %v716 = vrot.slane %v715, 4
      %vm717 = vcmp.lt.s32.totalorder %v715, %v716
      %v718 = vsel %vm717, %v715, %v716
      %v719 = vrot.slane %v718, 2
      %vm720 = vcmp.lt.s32.totalorder %v718, %v719
      %v721 = vsel %vm720, %v718, %v719
      %v722 = vrot.slane %v721, 1
      %vm723 = vcmp.lt.s32.totalorder %v721, %v722
      %v724 = vsel %vm723, %v721, %v722
      %vm725 = vcmp.lt.s32.totalorder %v690, %v694
      %v726 = vsel %vm725, %v690, %v694
      %vm727 = vcmp.lt.s32.totalorder %v692, %v696
      %v728 = vsel %vm727, %v692, %v696
      %vm729 = vcmp.lt.s32.totalorder %v726, %v698
      %v730 = vsel %vm729, %v726, %v698
      %vm731 = vcmp.lt.s32.totalorder %v728, %v700
      %v732 = vsel %vm731, %v728, %v700
      %v733 = vsel %vm396, %v702, 2147483647
      %vm734 = vcmp.lt.s32.totalorder %v730, %v733
      %v735 = vsel %vm734, %v730, %v733
      %vm736 = vcmp.lt.s32.totalorder %v735, %v732
      %v737 = vsel %vm736, %v735, %v732
      %v738 = vrot.slane %v737, 4
      %vm739 = vcmp.lt.s32.totalorder %v737, %v738
      %v740 = vsel %vm739, %v737, %v738
      %v741 = vrot.slane %v740, 2
      %vm742 = vcmp.lt.s32.totalorder %v740, %v741
      %v743 = vsel %vm742, %v740, %v741
      %v744 = vrot.slane %v743, 1
      %vm745 = vcmp.lt.s32.totalorder %v743, %v744
      %v746 = vsel %vm745, %v743, %v744
      %vm747 = vcmp.eq.s32.totalorder %v724, %v502
      %vm748 = vcmp.eq.s32.totalorder %v746, %v506
      %v749 = vsel %vm747, 1, 0
      %v750 = vsel %vm748, 1, 0
      %v751 = vcvt.s32.f32 %v749
      %v752 = vcvt.s32.f32 %v750
      %v753 = vld [vmem:[%s345] sm:$0x3]
      %v754 = vsel %vm390, %v673, 0.0
      %v755 = vsel %vm391, %v674, 0.0
      %v758 = vcombine.low %v754, %v755
      %v760 = vunpack.c.l.s4 1966171168
      %v761 = vunpack.c.0.s8 %v760
      %v762 = vlaneseq
      %v763 = vshrl.u32 %v762, 7
      %v764 = vsub.s32 %v761, %v763
      %v765 = vrot.slane %v758, %v764
      %v767 = vunpack.c.l.s4 1966171168
      %v768 = vunpack.c.0.s8 %v767
      %v769 = vlaneseq
      %v770 = vshrl.u32 %v769, 7
      %v771 = vsub.s32 %v768, %v770
      %v772 = vrot.slane %v765, %v771
      %v774 = vadd.f32 %v753, %v772
      %v775 = vlaneseq
      %vm776 = vcmp.ge.s32.totalorder %v775, 0
      %vm777 = vcmp.lt.s32.totalorder %v775, 256
      %vm778 = vmand %vm776, %vm777
      %779 = vst.msk [vmem:[%s345] sm:$0x3] %vm778, %v774
      %v780 = vld [vmem:[%s349] sm:$0x3]
      %v781 = vsel %vm390, %v657, 0.0
      %v782 = vsel %vm391, %v670, 0.0
      %v785 = vcombine.low %v781, %v782
      %v787 = vunpack.c.l.s4 1966171168
      %v788 = vunpack.c.0.s8 %v787
      %v789 = vlaneseq
      %v790 = vshrl.u32 %v789, 7
      %v791 = vsub.s32 %v788, %v790
      %v792 = vrot.slane %v785, %v791
      %v794 = vunpack.c.l.s4 1966171168
      %v795 = vunpack.c.0.s8 %v794
      %v796 = vlaneseq
      %v797 = vshrl.u32 %v796, 7
      %v798 = vsub.s32 %v795, %v797
      %v799 = vrot.slane %v792, %v798
      %v801 = vadd.f32 %v780, %v799
      %802 = vst.msk [vmem:[%s349] sm:$0x3] %vm778, %v801
      %v803 = vld [vmem:[%s353] sm:$0x3]
      %v804 = vsel %vm390, %v751, 0.0
      %v805 = vsel %vm391, %v752, 0.0
      %v808 = vcombine.low %v804, %v805
      %v810 = vunpack.c.l.s4 1966171168
      %v811 = vunpack.c.0.s8 %v810
      %v812 = vlaneseq
      %v813 = vshrl.u32 %v812, 7
      %v814 = vsub.s32 %v811, %v813
      %v815 = vrot.slane %v808, %v814
      %v817 = vunpack.c.l.s4 1966171168
      %v818 = vunpack.c.0.s8 %v817
      %v819 = vlaneseq
      %v820 = vshrl.u32 %v819, 7
      %v821 = vsub.s32 %v818, %v820
      %v822 = vrot.slane %v815, %v821
      %v824 = vadd.f32 %v803, %v822
      %825 = vst.msk [vmem:[%s353] sm:$0x3] %vm778, %v824
      %p826 = scmp.lt.s32.totalorder %s22, 1
      %s827 = scalar_select %p826, %s22, 1
      %s828 = smul.addr %s827, 2
      %s829 = scalar_lea.vmem %s3, %s828
      %p830 = scmp.lt.s32.totalorder %s22, 1
      %s831 = scalar_select %p830, %s22, 1
      %s832 = smul.addr %s831, 2
      %s833 = scalar_lea.vmem %s4, %s832
      %p834 = scmp.lt.s32.totalorder %s22, 1
      %s835 = scalar_select %p834, %s22, 1
      %s836 = smul.addr %s835, 2
      %s837 = scalar_lea.vmem %s5, %s836
      // Predicated region
      $region37: #{ce_and_dice_loss.1} parent=31 // pred_check
        %p838 = pneg %p143
      $region38: #{ce_and_dice_loss.1} parent=31 // pred_check_branch
        %840 = sbr.rel (%p838) target = $region40
      $region39: #{ce_and_dice_loss.1} parent=31 // pred_region
        _
      $region40: #{ce_and_dice_loss.1} parent=31 // pred_fallthru
        _
      // Predicated region
      $region41: #{ce_and_dice_loss.1} parent=31 // pred_check
        %p841 = pneg %p169
      $region42: #{ce_and_dice_loss.1} parent=31 // pred_check_branch
        %843 = sbr.rel (%p841) target = $region44
      $region43: #{ce_and_dice_loss.1} parent=31 // pred_region
        _
      $region44: #{ce_and_dice_loss.1} parent=31 // pred_fallthru
        _
      // Predicated region
      $region45: #{ce_and_dice_loss.1} parent=31 // pred_check
        %p844 = pneg %p195
      $region46: #{ce_and_dice_loss.1} parent=31 // pred_check_branch
        %846 = sbr.rel (%p844) target = $region48
      $region47: #{ce_and_dice_loss.1} parent=31 // pred_region
        _
      $region48: #{ce_and_dice_loss.1} parent=31 // pred_fallthru
        _
    $region32: #{ce_and_dice_loss.1} parent=5 // pred_fallthru
      _
    %p847 = scmp.le.s32.totalorder 2, %s12
    // Predicated region
    $region49: #{ce_and_dice_loss.1} parent=5 // pred_check
      %p848 = pneg %p847
    $region50: #{ce_and_dice_loss.1} parent=5 // pred_check_branch
      %850 = sbr.rel (%p848) target = $region52
    $region51: #{ce_and_dice_loss.1} parent=5 // pred_region
      %s851 = ssub.s32 %s12, 2
      // Predicated region
      $region53: #{ce_and_dice_loss.1} parent=51 // pred_check
        %p852 = pneg %p149
      $region54: #{ce_and_dice_loss.1} parent=51 // pred_check_branch
        %854 = sbr.rel (%p852) target = $region56
      $region55: #{ce_and_dice_loss.1} parent=51 // pred_region
        %p855 = scmp.lt.s32.totalorder %s25, 1
        %s856 = scalar_select %p855, %s25, 1
        %s857 = smul.addr %s856, 2
        %s858 = scalar_lea.vmem %s3, %s857
      $region56: #{ce_and_dice_loss.1} parent=51 // pred_fallthru
        _
      // Predicated region
      $region57: #{ce_and_dice_loss.1} parent=51 // pred_check
        %p859 = pneg %p175
      $region58: #{ce_and_dice_loss.1} parent=51 // pred_check_branch
        %861 = sbr.rel (%p859) target = $region60
      $region59: #{ce_and_dice_loss.1} parent=51 // pred_region
        %p862 = scmp.lt.s32.totalorder %s25, 1
        %s863 = scalar_select %p862, %s25, 1
        %s864 = smul.addr %s863, 2
        %s865 = scalar_lea.vmem %s4, %s864
      $region60: #{ce_and_dice_loss.1} parent=51 // pred_fallthru
        _
      // Predicated region
      $region61: #{ce_and_dice_loss.1} parent=51 // pred_check
        %p866 = pneg %p201
      $region62: #{ce_and_dice_loss.1} parent=51 // pred_check_branch
        %868 = sbr.rel (%p866) target = $region64
      $region63: #{ce_and_dice_loss.1} parent=51 // pred_region
        %p869 = scmp.lt.s32.totalorder %s25, 1
        %s870 = scalar_select %p869, %s25, 1
        %s871 = smul.addr %s870, 2
        %s872 = scalar_lea.vmem %s5, %s871
      $region64: #{ce_and_dice_loss.1} parent=51 // pred_fallthru
        _
    $region52: #{ce_and_dice_loss.1} parent=5 // pred_fallthru
      _
  $region6: #{ce_and_dice_loss.1} parent=0 // loop_footer
    %s16 = sadd.s32 1, %s12
  $region7: #{ce_and_dice_loss.1} parent=0 // loop_footer_branch
    %11 = sbr.rel target = $region3
  $region8: #{ce_and_dice_loss.1} parent=0 // loop_exit
    _

</llo_original>
